<compile_context>
chip_gen: v7x
topology: tpu7x:2x2x1
jax: 0.10.0
libtpu: 0.0.40
codegen_flags: <defaults>
</compile_context>

<pallas_src>
import jax
import jax.numpy as jnp
from jax.experimental import pallas as pl
from jax.experimental.pallas import tpu as pltpu


_SUB = 256            # inner lane chunk: bounds the f32 hidden live range to (128, 256)
_TILE_QUANTUM = 512   # batch-tile granularity (multiple of 128 lanes and of _SUB)
_MAX_TILE = 262144    # hard cap: ~36 MiB working set, fits v7x's 64 MiB VMEM
_DEFAULT_TILE = 65536


def _round_up(x, m):
    return ((x + m - 1) // m) * m


def _pick_tile(batch, max_tile):
    """Batch tile: multiple of _TILE_QUANTUM, big, but >=2 grid steps when possible."""
    max_tile = max(_TILE_QUANTUM, min(int(max_tile), _MAX_TILE))
    max_tile = (max_tile // _TILE_QUANTUM) * _TILE_QUANTUM
    want = _round_up(max(-(-batch // 2), 1), _TILE_QUANTUM)   # ceil(batch/2), rounded up
    return min(max_tile, want)


def _policy_kernel(x_ref, w1_ref, w2_ref, b2_ref, o_ref):
    """One batch tile, feature-major (batch = lane axis).

    x_ref : (5, TB)   rows 0..3 = features, row 4 = 1.0 (layer-1 bias K-augmentation)
    w1_ref: (128, 5)  [W1^T | b1]
    w2_ref: (128, 1)  w2[:,1] - w2[:,0]   (difference projection)
    b2_ref: (1, 1)    b2[1] - b2[0]
    o_ref : (2, TB)   row 0 = p(class 0), row 1 = p(class 1)
    """
    # Hoist the tiny weights out of the inner loop (no per-iteration loads/broadcasts).
    w1 = w1_ref[...]
    w2 = w2_ref[...]
    b2 = b2_ref[...]
    tb = x_ref.shape[1]
    n_sub = tb // _SUB

    @pl.loop(0, n_sub)
    def _(j):
        c0 = pl.multiple_of(j * _SUB, _SUB)
        cols = pl.ds(c0, _SUB)
        xc = x_ref[:, cols]                                        # (5, SUB)

        # Layer 1 (+ bias via K-augmentation) on the MXU; Dropout(eval) = identity;
        # ReLU on the VPU.
        h = jnp.dot(w1, xc, preferred_element_type=jnp.float32)    # (128, SUB)
        h = jnp.maximum(h, 0.0)

        # Layer 2 as the single logit-difference projection, done as a VPU multiply
        # + sublane (XLU) reduction (avoids the pathological M=1/K=128 MXU shape).
        d = jnp.sum(h * w2, axis=0, keepdims=True) + b2            # (1, SUB)

        # softmax over 2 classes == sigmoid of the logit difference; reciprocal on EUP.
        p1 = pl.reciprocal(1.0 + jnp.exp(-d), approx=True)         # (1, SUB)
        o_ref[1:2, cols] = p1
        o_ref[0:1, cols] = 1.0 - p1


def _policy_pallas(xt_aug, w1_aug_t, w2_col, b2d, tb):
    """Core call. xt_aug: (5, B_pad) feature-major, row 4 == 1, B_pad % tb == 0."""
    f, b_pad = xt_aug.shape
    assert f == 5 and b_pad % tb == 0 and tb % _SUB == 0

    cost = pl.CostEstimate(
        flops=int(b_pad) * (2 * 5 * 128 + 3 * 128 + 8),
        transcendentals=2 * int(b_pad),
        bytes_accessed=4 * (7 * int(b_pad) + 128 * 5 + 128 + 1),
    )
    # Working set ~ 128*tb bytes (double-buffered (5,tb)/(2,tb) tiles, sublane-padded)
    # + weights + the (128, _SUB) hidden chunk.  Only raise the scoped limit when the
    # tile actually needs it; never above 56 MiB (v7x physical VMEM is 64 MiB).
    vmem_limit = min(max(128 * tb + (4 << 20), 32 << 20), 56 << 20)

    return pl.pallas_call(
        _policy_kernel,
        out_shape=jax.ShapeDtypeStruct((2, b_pad), jnp.float32),
        grid_spec=pltpu.PrefetchScalarGridSpec(
            num_scalar_prefetch=0,
            grid=(b_pad // tb,),
            in_specs=[
                # Batch-tiled, lane-dense input (double-buffered by Pallas).
                pl.BlockSpec((5, tb), lambda i: (0, i)),
                # Tiny weights: constant index_map -> VMEM-resident.
                pl.BlockSpec((128, 5), lambda i: (0, 0)),
                pl.BlockSpec((128, 1), lambda i: (0, 0)),
                pl.BlockSpec((1, 1), lambda i: (0, 0)),
            ],
            out_specs=pl.BlockSpec((2, tb), lambda i: (0, i)),
        ),
        compiler_params=pltpu.CompilerParams(
            dimension_semantics=("parallel",),
            vmem_limit_bytes=int(vmem_limit),
        ),
        cost_estimate=cost,
    )(xt_aug, w1_aug_t, w2_col, b2d)


def make_policy_params(w1, b1, w2, b2):
    """Preprocess weights once. w1:(4,128) [in,out], b1:(1,128)|(128,), w2:(128,2), b2:(1,2)|(2,)."""
    w1 = jnp.asarray(w1, jnp.float32)
    b1 = jnp.asarray(b1, jnp.float32).reshape(128, 1)
    w2 = jnp.asarray(w2, jnp.float32)
    b2 = jnp.asarray(b2, jnp.float32).reshape(2)
    w1_aug_t = jnp.concatenate([w1.T, b1], axis=1)          # (128, 5) = [W1^T | b1]
    w2_col = (w2[:, 1] - w2[:, 0]).reshape(128, 1)          # (128, 1)
    b2d = (b2[1] - b2[0]).reshape(1, 1)                     # (1, 1)
    return w1_aug_t, w2_col, b2d


def policy_probs_feature_major(xt, w1_aug_t, w2_col, b2d, *, max_tile=_DEFAULT_TILE):
    """Transpose-free path: xt (4, B) feature-major -> probs (2, B) feature-major.

    The only wrapper-side copy is one pad that appends the bias ones-row and the
    tile-tail columns (producers that emit the (5, B_pad) layout directly can call
    `_policy_pallas` with zero extra HBM passes)."""
    _, B = xt.shape
    tb = _pick_tile(B, max_tile)
    b_pad = _round_up(B, tb)
    xt_aug = jnp.pad(jnp.asarray(xt, jnp.float32), ((0, 1), (0, b_pad - B)),
                     constant_values=1.0)
    return _policy_pallas(xt_aug, w1_aug_t, w2_col, b2d, tb)[:, :B]


def policy_forward(x, w1, b1, w2, b2, *, max_tile=_DEFAULT_TILE):
    """PyTorch-layout adapter: x (B, 4) -> probs (B, 2).

    The (B,4)<->(4,B) layout conversion costs extra HBM passes outside the kernel;
    latency/bandwidth-sensitive callers should keep activations feature-major and
    use `policy_probs_feature_major` instead."""
    x = jnp.asarray(x, jnp.float32)
    B = x.shape[0]
    w1_aug_t, w2_col, b2d = make_policy_params(w1, b1, w2, b2)
    tb = _pick_tile(B, max_tile)
    b_pad = _round_up(B, tb)
    # Single conversion op: transpose + bias ones-row + tile-tail padding together.
    xt_aug = jnp.pad(x.T, ((0, 1), (0, b_pad - B)), constant_values=1.0)
    probs_t = _policy_pallas(xt_aug, w1_aug_t, w2_col, b2d, tb)
    return probs_t[:, :B].T


def init_params(key):
    """Deterministic init mimicking nn.Linear's U(-1/sqrt(fan_in), 1/sqrt(fan_in))."""
    k1, k2, k3, k4 = jax.random.split(key, 4)
    bound1 = 1.0 / jnp.sqrt(4.0)
    bound2 = 1.0 / jnp.sqrt(128.0)
    # Stored as (in_features, out_features): logical forward is x @ W + b.
    w1 = jax.random.uniform(k1, (4, 128), jnp.float32, -bound1, bound1)
    b1 = jax.random.uniform(k2, (1, 128), jnp.float32, -bound1, bound1)
    w2 = jax.random.uniform(k3, (128, 2), jnp.float32, -bound2, bound2)
    b2 = jax.random.uniform(k4, (1, 2), jnp.float32, -bound2, bound2)
    return w1, b1, w2, b2


def _reference(x, w1, b1, w2, b2):
    h = jnp.maximum(x @ w1 + b1, 0.0)          # eval-mode dropout == identity
    return jax.nn.softmax(h @ w2 + b2, axis=1)


if __name__ == "__main__":
    key = jax.random.PRNGKey(0)
    k_params, k_x1, k_x2 = jax.random.split(key, 3)
    w1, b1, w2, b2 = init_params(k_params)

    # approx reciprocal (EUP) introduces ~1e-4-level absolute error on the probs.
    TOL = 2e-3

    # Case 1: tiny batch of 4-dim observations (CartPole-style), single tile.
    x1 = jax.random.normal(k_x1, (8, 4), dtype=jnp.float32)
    p1 = jax.block_until_ready(policy_forward(x1, w1, b1, w2, b2))
    r1 = _reference(x1, w1, b1, w2, b2)
    assert p1.shape == (8, 2)
    assert jnp.allclose(p1, r1, atol=TOL), "mismatch vs reference (B=8)"
    assert jnp.allclose(jnp.sum(p1, axis=1), 1.0, atol=1e-5)

    # Feature-major fast path (no wrapper transposes) on the same data.
    params = make_policy_params(w1, b1, w2, b2)
    p1_fm = jax.block_until_ready(policy_probs_feature_major(x1.T, *params))
    assert p1_fm.shape == (2, 8)
    assert jnp.allclose(p1_fm, r1.T, atol=TOL), "mismatch vs reference (feature-major)"

    # Case 2: non-multiple batch with a small tile to exercise the multi-tile grid,
    # the inner lane-chunk loop and tail padding (TB=512, grid=(3,), SUB=256).
    x2 = jax.random.normal(k_x2, (1200, 4), dtype=jnp.float32)
    p2 = jax.block_until_ready(policy_forward(x2, w1, b1, w2, b2, max_tile=512))
    r2 = _reference(x2, w1, b1, w2, b2)
    assert p2.shape == (1200, 2)
    assert jnp.allclose(p2, r2, atol=TOL), "mismatch vs reference (B=1200)"
    assert jnp.allclose(jnp.sum(p2, axis=1), 1.0, atol=1e-5)

    print("KERNEL_OK")
</pallas_src>

<mosaic_0001>
module attributes {stable_mosaic.version = 11 : i64} {
  func.func @_policy_kernel(%arg0: i32, %arg1: memref<5x512xf32, #tpu.memory_space<vmem>>, %arg2: memref<128x5xf32, #tpu.memory_space<vmem>>, %arg3: memref<128x1xf32, #tpu.memory_space<vmem>>, %arg4: memref<1x1xf32, #tpu.memory_space<vmem>>, %arg5: memref<2x512xf32, #tpu.memory_space<vmem>>) attributes {dimension_semantics = [#tpu.dimension_semantics<parallel>], iteration_bounds = array<i64: 1>, scalar_prefetch = 0 : i64, scratch_operands = 0 : i64, tpu.core_type = #tpu.core_type<tc>, window_params = [{transform_indices = @transform_0, window_bounds = array<i64: 5, 512>}, {pipeline_mode = #tpu.pipeline_mode<synchronous>, transform_indices = @transform_1, window_bounds = array<i64: 128, 5>}, {pipeline_mode = #tpu.pipeline_mode<synchronous>, transform_indices = @transform_2, window_bounds = array<i64: 128, 1>}, {pipeline_mode = #tpu.pipeline_mode<synchronous>, transform_indices = @transform_3, window_bounds = array<i64: 1, 1>}, {transform_indices = @transform_4, window_bounds = array<i64: 2, 512>}]} {
    %c0 = arith.constant 0 : index
    %c0_0 = arith.constant 0 : index
    %0 = vector.load %arg2[%c0, %c0_0] : memref<128x5xf32, #tpu.memory_space<vmem>>, vector<128x5xf32>
    %c0_1 = arith.constant 0 : index
    %c0_2 = arith.constant 0 : index
    %1 = vector.load %arg3[%c0_1, %c0_2] : memref<128x1xf32, #tpu.memory_space<vmem>>, vector<128x1xf32>
    %c0_3 = arith.constant 0 : index
    %c0_4 = arith.constant 0 : index
    %2 = vector.load %arg4[%c0_3, %c0_4] : memref<1x1xf32, #tpu.memory_space<vmem>>, vector<1x1xf32>
    %c0_i32 = arith.constant 0 : i32
    %c2_i32 = arith.constant 2 : i32
    %3 = arith.addi %c0_i32, %c2_i32 : i32
    %c1_i32 = arith.constant 1 : i32
    scf.for %arg6 = %c0_i32 to %3 step %c1_i32  : i32 {
      %c1_i32_6 = arith.constant 1 : i32
      %4 = arith.muli %arg6, %c1_i32_6 : i32
      %c0_i32_7 = arith.constant 0 : i32
      %5 = arith.addi %c0_i32_7, %4 : i32
      %c256_i32 = arith.constant 256 : i32
      %6 = arith.muli %5, %c256_i32 : i32
      %7 = tpu.assume_multiple %6, 256 : i32
      %c0_8 = arith.constant 0 : index
      %8 = arith.index_cast %7 : i32 to index
      %9 = vector.load %arg1[%c0_8, %8] : memref<5x512xf32, #tpu.memory_space<vmem>>, vector<5x256xf32>
      %cst = arith.constant dense<0.000000e+00> : vector<128x256xf32>
      %10 = tpu.matmul %0, %9, %cst {dimension_numbers = #tpu.dot_dimension_numbers<[1], [0], [0], [1], [0, 0, 1, 1], [], []>} : vector<128x5xf32>, vector<5x256xf32>, vector<128x256xf32> -> vector<128x256xf32>
      %cst_9 = arith.constant 0.000000e+00 : f32
      %11 = vector.broadcast %cst_9 : f32 to vector<128x256xf32>
      %12 = arith.maximumf %10, %11 : vector<128x256xf32>
      %13 = vector.broadcast %1 : vector<128x1xf32> to vector<128x256xf32>
      %14 = arith.mulf %12, %13 : vector<128x256xf32>
      %cst_10 = arith.constant dense<0.000000e+00> : vector<256xf32>
      %15 = vector.multi_reduction <add>, %14, %cst_10 [0] : vector<128x256xf32> to vector<256xf32>
      %16 = vector.shape_cast %15 : vector<256xf32> to vector<1x256xf32>
      %17 = vector.broadcast %2 : vector<1x1xf32> to vector<1x256xf32>
      %18 = arith.addf %16, %17 : vector<1x256xf32>
      %cst_11 = arith.constant 0.000000e+00 : f32
      %19 = vector.broadcast %cst_11 : f32 to vector<1x256xf32>
      %20 = arith.subf %19, %18 : vector<1x256xf32>
      %21 = math.exp %20 : vector<1x256xf32>
      %cst_12 = arith.constant 1.000000e+00 : f32
      %22 = vector.broadcast %cst_12 : f32 to vector<1x256xf32>
      %23 = arith.addf %22, %21 : vector<1x256xf32>
      %24 = tpu.reciprocal %23 {approx = true} : vector<1x256xf32> -> vector<1x256xf32>
      %c1 = arith.constant 1 : index
      %25 = arith.index_cast %7 : i32 to index
      %26 = vector.load %arg5[%c1, %25] : memref<2x512xf32, #tpu.memory_space<vmem>>, vector<1x256xf32>
      tpu.vector_store %arg5[%c1, %25], %24 {strides = array<i32>} : memref<2x512xf32, #tpu.memory_space<vmem>>, vector<1x256xf32>,
      %cst_13 = arith.constant 1.000000e+00 : f32
      %27 = vector.broadcast %cst_13 : f32 to vector<1x256xf32>
      %28 = arith.subf %27, %24 : vector<1x256xf32>
      %c0_14 = arith.constant 0 : index
      %29 = arith.index_cast %7 : i32 to index
      %30 = vector.load %arg5[%c0_14, %29] : memref<2x512xf32, #tpu.memory_space<vmem>>, vector<1x256xf32>
      tpu.vector_store %arg5[%c0_14, %29], %28 {strides = array<i32>} : memref<2x512xf32, #tpu.memory_space<vmem>>, vector<1x256xf32>,
    }
    %c2_i32_5 = arith.constant 2 : i32
    return
  }
  func.func @transform_0(%arg0: i32) -> (i32, i32) {
    %c0_i32 = arith.constant 0 : i32
    %c0_i32_0 = arith.constant 0 : i32
    return %c0_i32, %arg0 : i32, i32
  }
  func.func @transform_1(%arg0: i32) -> (i32, i32) {
    %c0_i32 = arith.constant 0 : i32
    %c0_i32_0 = arith.constant 0 : i32
    %c0_i32_1 = arith.constant 0 : i32
    return %c0_i32, %c0_i32_0 : i32, i32
  }
  func.func @transform_2(%arg0: i32) -> (i32, i32) {
    %c0_i32 = arith.constant 0 : i32
    %c0_i32_0 = arith.constant 0 : i32
    %c0_i32_1 = arith.constant 0 : i32
    return %c0_i32, %c0_i32_0 : i32, i32
  }
  func.func @transform_3(%arg0: i32) -> (i32, i32) {
    %c0_i32 = arith.constant 0 : i32
    %c0_i32_0 = arith.constant 0 : i32
    %c0_i32_1 = arith.constant 0 : i32
    return %c0_i32, %c0_i32_0 : i32, i32
  }
  func.func @transform_4(%arg0: i32) -> (i32, i32) {
    %c0_i32 = arith.constant 0 : i32
    %c0_i32_0 = arith.constant 0 : i32
    return %c0_i32, %arg0 : i32, i32
  }
}

</mosaic_0001>

<llo_original>
// kernel: tpu_custom_call.1
$region0: #{tpu_custom_call.1}
  #allocation0 [shape = 'u32[]', space=smem, size = 0x4, offset = 0x4, fixed_abs, tag = 'smem constant byte address 0x4 - core index']
  #allocation1 [shape = 'u32[144,128]{1,0:T(1,128)}', space=vmem, size = 0x12000, scoped, tag = 'internal scratch']
  #allocation2 [shape = 'f32[1,1]{1,0:T(1,128)S(1)}', space=vmem, size = 0x200, scoped, tag = 'scoped memory for tpu_custom_call.1']
  %s0 = inlined_call_operand.vmem [shape: f32[5,512], index: 0, kind: input, shape index: {}]
  %s1 = inlined_call_operand.vmem [shape: f32[128,5], index: 1, kind: input, shape index: {}]
  %s2 = inlined_call_operand.vmem [shape: f32[128,1], index: 2, kind: input, shape index: {}]
  %s3 = inlined_call_operand.<no memory space> [shape: f32[1,1], index: 3, kind: input, shape index: {}]
  %s4 = inlined_call_operand.hbm [shape: f32[2,512], index: 4, kind: output, shape index: {}]
  %s5 = sld [smem:[#allocation0]]
  $region33: #{tpu_custom_call.1} parent=0
    _
  %s7 = ssub.s32 1, %s5
  %s8 = scalar_select 0, %s7, %s5
  %v9 = vstv %s3
  %10 = vst [vmem:[#allocation2] sm:$0x1] %v9
  $region1: #{tpu_custom_call.1} parent=0
    #allocation3 [shape = 'u8[4096]{0}', space=vmem, size = 0x1000, scoped, tag = 'output window, operand 0, single buffered']
    #allocation4 [shape = 's32[1]{0}', space=sflag, size = 0x4, scoped, tag = 'scoped memory for tpu_custom_call.1']
    %11 = vsyncpa [#allocation4], 0
    // Predicated region
    $region2: #{tpu_custom_call.1} parent=1 // pred_check
      _
    $region3: #{tpu_custom_call.1} parent=1 // pred_check_branch
      %13 = sbr.rel (0) target = $region5
    $region4: #{tpu_custom_call.1} parent=1 // pred_region
      _
    $region5: #{tpu_custom_call.1} parent=1 // pred_fallthru
      _
    // Predicated region
    $region6: #{tpu_custom_call.1} parent=1 // pred_check
      _
    $region7: #{tpu_custom_call.1} parent=1 // pred_check_branch
      %15 = sbr.rel (0) target = $region9
    $region8: #{tpu_custom_call.1} parent=1 // pred_region
      _
    $region9: #{tpu_custom_call.1} parent=1 // pred_fallthru
      _
    // Predicated region
    $region10: #{tpu_custom_call.1} parent=1 // pred_check
      _
    $region11: #{tpu_custom_call.1} parent=1 // pred_check_branch
      %17 = sbr.rel (0) target = $region13
    $region12: #{tpu_custom_call.1} parent=1 // pred_region
      _
    $region13: #{tpu_custom_call.1} parent=1 // pred_fallthru
      _
    // Predicated region
    $region14: #{tpu_custom_call.1} parent=1 // pred_check
      _
    $region15: #{tpu_custom_call.1} parent=1 // pred_check_branch
      %19 = sbr.rel (0) target = $region17
    $region16: #{tpu_custom_call.1} parent=1 // pred_region
      _
    $region17: #{tpu_custom_call.1} parent=1 // pred_fallthru
      _
    %v20 = vld [vmem:[%s1] sm:$0xff]
    %v21 = vld [vmem:[%s1 + $0x8] sm:$0xff]
    %v22 = vld [vmem:[%s1 + $0x10] sm:$0xff]
    %v23 = vld [vmem:[%s1 + $0x18] sm:$0xff]
    %v24 = vld [vmem:[%s1 + $0x20] sm:$0xff]
    %v25 = vld [vmem:[%s1 + $0x28] sm:$0xff]
    %v26 = vld [vmem:[%s1 + $0x30] sm:$0xff]
    %v27 = vld [vmem:[%s1 + $0x38] sm:$0xff]
    %v28 = vld [vmem:[%s1 + $0x40] sm:$0xff]
    %v29 = vld [vmem:[%s1 + $0x48] sm:$0xff]
    %v30 = vld [vmem:[%s1 + $0x50] sm:$0xff]
    %v31 = vld [vmem:[%s1 + $0x58] sm:$0xff]
    %v32 = vld [vmem:[%s1 + $0x60] sm:$0xff]
    %v33 = vld [vmem:[%s1 + $0x68] sm:$0xff]
    %v34 = vld [vmem:[%s1 + $0x70] sm:$0xff]
    %v35 = vld [vmem:[%s1 + $0x78] sm:$0xff]
    %v36 = vld [vmem:[%s2] sm:$0xff]
    %v37 = vld [vmem:[%s2 + $0x8] sm:$0xff]
    %v38 = vld [vmem:[%s2 + $0x10] sm:$0xff]
    %v39 = vld [vmem:[%s2 + $0x18] sm:$0xff]
    %v40 = vld [vmem:[%s2 + $0x20] sm:$0xff]
    %v41 = vld [vmem:[%s2 + $0x28] sm:$0xff]
    %v42 = vld [vmem:[%s2 + $0x30] sm:$0xff]
    %v43 = vld [vmem:[%s2 + $0x38] sm:$0xff]
    %v44 = vld [vmem:[%s2 + $0x40] sm:$0xff]
    %v45 = vld [vmem:[%s2 + $0x48] sm:$0xff]
    %v46 = vld [vmem:[%s2 + $0x50] sm:$0xff]
    %v47 = vld [vmem:[%s2 + $0x58] sm:$0xff]
    %v48 = vld [vmem:[%s2 + $0x60] sm:$0xff]
    %v49 = vld [vmem:[%s2 + $0x68] sm:$0xff]
    %v50 = vld [vmem:[%s2 + $0x70] sm:$0xff]
    %v51 = vld [vmem:[%s2 + $0x78] sm:$0xff]
    %v52 = vld [vmem:[#allocation2] sm:$0x1]
    loop: start=0, step=1, limit=2
    $region18: #{tpu_custom_call.1} parent=1 // loop_pre_header
      _
    $region19: #{tpu_custom_call.1} parent=1 // loop_header
      %s54 = sphi 0, %s58
      %p55 = scmp.ge.s32.totalorder %s54, 2
    $region20: #{tpu_custom_call.1} parent=1 // loop_header_branch
      %57 = sbr.rel (%p55) target = $region24
    $region21: #{tpu_custom_call.1} parent=1 // loop_body
      %s59 = smul.u32 %s54, 256
      %s60 = sshra.s32 %s59, 7
      %s61 = sand.u32 %s59, 127
      %s62 = smul.addr %s60, 8
      %s63 = scalar_lea.vmem %s0, %s62
      %v64 = vld [vmem:[%s63] sm:$0x1f]
      %v65 = vld [vmem:[%s63 + $0x8] sm:$0x1f]
      %vm66 = vcmask 39936
      %v68 = vsel %vm66, %v20, 0
      %v71 = vsel %vm66, %v21, 0
      %v74 = vsel %vm66, %v22, 0
      %v77 = vsel %vm66, %v23, 0
      %v80 = vsel %vm66, %v24, 0
      %v83 = vsel %vm66, %v25, 0
      %v86 = vsel %vm66, %v26, 0
      %v89 = vsel %vm66, %v27, 0
      %v92 = vsel %vm66, %v28, 0
      %v95 = vsel %vm66, %v29, 0
      %v98 = vsel %vm66, %v30, 0
      %v101 = vsel %vm66, %v31, 0
      %v104 = vsel %vm66, %v32, 0
      %v107 = vsel %vm66, %v33, 0
      %v110 = vsel %vm66, %v34, 0
      %v113 = vsel %vm66, %v35, 0
      %vm115 = vcmask 1044480
      %v117 = vsel %vm115, %v64, 0
      %v120 = vsel %vm115, %v65, 0
      %122 = vmatprep.subr.mxu0 %v120
      %123 = vmatpush1.msra.mxu0 %v117
      %124 = vmatprep.subr.mxu0 0.0
      %125 = vmatpush1.msra.mxu0 0.0
      %126 = vmatprep.subr.mxu0 0.0
      %127 = vmatpush1.msra.mxu0 0.0
      %128 = vmatprep.subr.mxu0 0.0
      %129 = vmatpush1.msra.mxu0 0.0
      %130 = vmatprep.subr.mxu0 0.0
      %131 = vmatpush1.msra.mxu0 0.0
      %132 = vmatprep.subr.mxu0 0.0
      %133 = vmatpush1.msra.mxu0 0.0
      %134 = vmatprep.subr.mxu0 0.0
      %135 = vmatpush1.msra.mxu0 0.0
      %136 = vmatprep.subr.mxu0 0.0
      %137 = vmatpush1.msra.mxu0 0.0
      %138 = vmatprep.subr.mxu0 0.0
      %139 = vmatpush1.msra.mxu0 0.0
      %140 = vmatprep.subr.mxu0 0.0
      %141 = vmatpush1.msra.mxu0 0.0
      %142 = vmatprep.subr.mxu0 0.0
      %143 = vmatpush1.msra.mxu0 0.0
      %144 = vmatprep.subr.mxu0 0.0
      %145 = vmatpush1.msra.mxu0 0.0
      %146 = vmatprep.subr.mxu0 0.0
      %147 = vmatpush1.msra.mxu0 0.0
      %148 = vmatprep.subr.mxu0 0.0
      %149 = vmatpush1.msra.mxu0 0.0
      %150 = vmatprep.subr.mxu0 0.0
      %151 = vmatpush1.msra.mxu0 0.0
      %152 = vmatprep.subr.mxu0 0.0
      %153 = vmatpush1.msra.mxu0 0.0
      %154 = vmatprep.subr.mxu0 0.0
      %155 = vmatpush1.msra.mxu0 0.0
      %156 = vmatprep.subr.mxu0 0.0
      %157 = vmatpush1.msra.mxu0 0.0
      %158 = vmatprep.subr.mxu0 0.0
      %159 = vmatpush1.msra.mxu0 0.0
      %160 = vmatprep.subr.mxu0 0.0
      %161 = vmatpush1.msra.mxu0 0.0
      %162 = vmatprep.subr.mxu0 0.0
      %163 = vmatpush1.msra.mxu0 0.0
      %164 = vmatprep.subr.mxu0 0.0
      %165 = vmatpush1.msra.mxu0 0.0
      %166 = vmatprep.subr.mxu0 0.0
      %167 = vmatpush1.msra.mxu0 0.0
      %168 = vmatprep.subr.mxu0 0.0
      %169 = vmatpush1.msra.mxu0 0.0
      %170 = vmatprep.subr.mxu0 0.0
      %171 = vmatpush1.msra.mxu0 0.0
      %172 = vmatprep.subr.mxu0 0.0
      %173 = vmatpush1.msra.mxu0 0.0
      %174 = vmatprep.subr.mxu0 0.0
      %175 = vmatpush1.msra.mxu0 0.0
      %176 = vmatprep.subr.mxu0 0.0
      %177 = vmatpush1.msra.mxu0 0.0
      %178 = vmatprep.subr.mxu0 0.0
      %179 = vmatpush1.msra.mxu0 0.0
      %180 = vmatprep.subr.mxu0 0.0
      %181 = vmatpush1.msra.mxu0 0.0
      %182 = vmatprep.subr.mxu0 0.0
      %183 = vmatpush1.msra.mxu0 0.0
      %184 = vmatprep.subr.mxu0 0.0
      %185 = vmatpush1.msra.mxu0 0.0
      %186 = vmatprep.mubr.f32.mxu0 0.0
      %187 = vmatmul.mubr.f32.gmra.mrb[0].mxu0 %v68
      %v188 = vpop.f32.mrb[0].mxu0
      %v189 = vadd.f32 0.0, %v188
      %v190 = vpop.f32.mrb[0].mxu0
      %v191 = vadd.f32 0.0, %v190
      %192 = vmatprep.mubr.f32.mxu0 0.0
      %193 = vmatmul.mubr.f32.gmra.mrb[0].mxu0 %v71
      %v194 = vpop.f32.mrb[0].mxu0
      %v195 = vadd.f32 0.0, %v194
      %v196 = vpop.f32.mrb[0].mxu0
      %v197 = vadd.f32 0.0, %v196
      %198 = vmatprep.mubr.f32.mxu0 0.0
      %199 = vmatmul.mubr.f32.gmra.mrb[0].mxu0 %v74
      %v200 = vpop.f32.mrb[0].mxu0
      %v201 = vadd.f32 0.0, %v200
      %v202 = vpop.f32.mrb[0].mxu0
      %v203 = vadd.f32 0.0, %v202
      %204 = vmatprep.mubr.f32.mxu0 0.0
      %205 = vmatmul.mubr.f32.gmra.mrb[0].mxu0 %v77
      %v206 = vpop.f32.mrb[0].mxu0
      %v207 = vadd.f32 0.0, %v206
      %v208 = vpop.f32.mrb[0].mxu0
      %v209 = vadd.f32 0.0, %v208
      %210 = vmatprep.mubr.f32.mxu0 0.0
      %211 = vmatmul.mubr.f32.gmra.mrb[0].mxu0 %v80
      %v212 = vpop.f32.mrb[0].mxu0
      %v213 = vadd.f32 0.0, %v212
      %v214 = vpop.f32.mrb[0].mxu0
      %v215 = vadd.f32 0.0, %v214
      %216 = vmatprep.mubr.f32.mxu0 0.0
      %217 = vmatmul.mubr.f32.gmra.mrb[0].mxu0 %v83
      %v218 = vpop.f32.mrb[0].mxu0
      %v219 = vadd.f32 0.0, %v218
      %v220 = vpop.f32.mrb[0].mxu0
      %v221 = vadd.f32 0.0, %v220
      %222 = vmatprep.mubr.f32.mxu0 0.0
      %223 = vmatmul.mubr.f32.gmra.mrb[0].mxu0 %v86
      %v224 = vpop.f32.mrb[0].mxu0
      %v225 = vadd.f32 0.0, %v224
      %v226 = vpop.f32.mrb[0].mxu0
      %v227 = vadd.f32 0.0, %v226
      %228 = vmatprep.mubr.f32.mxu0 0.0
      %229 = vmatmul.mubr.f32.gmra.mrb[0].mxu0 %v89
      %v230 = vpop.f32.mrb[0].mxu0
      %v231 = vadd.f32 0.0, %v230
      %v232 = vpop.f32.mrb[0].mxu0
      %v233 = vadd.f32 0.0, %v232
      %234 = vmatprep.mubr.f32.mxu0 0.0
      %235 = vmatmul.mubr.f32.gmra.mrb[0].mxu0 %v92
      %v236 = vpop.f32.mrb[0].mxu0
      %v237 = vadd.f32 0.0, %v236
      %v238 = vpop.f32.mrb[0].mxu0
      %v239 = vadd.f32 0.0, %v238
      %240 = vmatprep.mubr.f32.mxu0 0.0
      %241 = vmatmul.mubr.f32.gmra.mrb[0].mxu0 %v95
      %v242 = vpop.f32.mrb[0].mxu0
      %v243 = vadd.f32 0.0, %v242
      %v244 = vpop.f32.mrb[0].mxu0
      %v245 = vadd.f32 0.0, %v244
      %246 = vmatprep.mubr.f32.mxu0 0.0
      %247 = vmatmul.mubr.f32.gmra.mrb[0].mxu0 %v98
      %v248 = vpop.f32.mrb[0].mxu0
      %v249 = vadd.f32 0.0, %v248
      %v250 = vpop.f32.mrb[0].mxu0
      %v251 = vadd.f32 0.0, %v250
      %252 = vmatprep.mubr.f32.mxu0 0.0
      %253 = vmatmul.mubr.f32.gmra.mrb[0].mxu0 %v101
      %v254 = vpop.f32.mrb[0].mxu0
      %v255 = vadd.f32 0.0, %v254
      %v256 = vpop.f32.mrb[0].mxu0
      %v257 = vadd.f32 0.0, %v256
      %258 = vmatprep.mubr.f32.mxu0 0.0
      %259 = vmatmul.mubr.f32.gmra.mrb[0].mxu0 %v104
      %v260 = vpop.f32.mrb[0].mxu0
      %v261 = vadd.f32 0.0, %v260
      %v262 = vpop.f32.mrb[0].mxu0
      %v263 = vadd.f32 0.0, %v262
      %264 = vmatprep.mubr.f32.mxu0 0.0
      %265 = vmatmul.mubr.f32.gmra.mrb[0].mxu0 %v107
      %v266 = vpop.f32.mrb[0].mxu0
      %v267 = vadd.f32 0.0, %v266
      %v268 = vpop.f32.mrb[0].mxu0
      %v269 = vadd.f32 0.0, %v268
      %270 = vmatprep.mubr.f32.mxu0 0.0
      %271 = vmatmul.mubr.f32.gmra.mrb[0].mxu0 %v110
      %v272 = vpop.f32.mrb[0].mxu0
      %v273 = vadd.f32 0.0, %v272
      %v274 = vpop.f32.mrb[0].mxu0
      %v275 = vadd.f32 0.0, %v274
      %276 = vmatprep.mubr.f32.mxu0 0.0
      %277 = vmatmul.mubr.f32.gmra.mrb[0].mxu0 %v113
      %v278 = vpop.f32.mrb[0].mxu0
      %v279 = vadd.f32 0.0, %v278
      %v280 = vpop.f32.mrb[0].mxu0
      %v281 = vadd.f32 0.0, %v280
      %282 = vdwg.mxu0
      %v283 = vmax.f32 %v189, 0.0
      %v284 = vmax.f32 %v191, 0.0
      %v285 = vmax.f32 %v195, 0.0
      %v286 = vmax.f32 %v197, 0.0
      %v287 = vmax.f32 %v201, 0.0
      %v288 = vmax.f32 %v203, 0.0
      %v289 = vmax.f32 %v207, 0.0
      %v290 = vmax.f32 %v209, 0.0
      %v291 = vmax.f32 %v213, 0.0
      %v292 = vmax.f32 %v215, 0.0
      %v293 = vmax.f32 %v219, 0.0
      %v294 = vmax.f32 %v221, 0.0
      %v295 = vmax.f32 %v225, 0.0
      %v296 = vmax.f32 %v227, 0.0
      %v297 = vmax.f32 %v231, 0.0
      %v298 = vmax.f32 %v233, 0.0
      %v299 = vmax.f32 %v237, 0.0
      %v300 = vmax.f32 %v239, 0.0
      %v301 = vmax.f32 %v243, 0.0
      %v302 = vmax.f32 %v245, 0.0
      %v303 = vmax.f32 %v249, 0.0
      %v304 = vmax.f32 %v251, 0.0
      %v305 = vmax.f32 %v255, 0.0
      %v306 = vmax.f32 %v257, 0.0
      %v307 = vmax.f32 %v261, 0.0
      %v308 = vmax.f32 %v263, 0.0
      %v309 = vmax.f32 %v267, 0.0
      %v310 = vmax.f32 %v269, 0.0
      %v311 = vmax.f32 %v273, 0.0
      %v312 = vmax.f32 %v275, 0.0
      %v313 = vmax.f32 %v279, 0.0
      %v314 = vmax.f32 %v281, 0.0
      %316 = vset.pattern.permute.xlu0 0
      %317 = vperm.xlu0 %316, %v36
      %v318 = vpop.permute.xlu0 %317
      %321 = vset.pattern.permute.xlu0 0
      %322 = vperm.xlu0 %321, %v37
      %v323 = vpop.permute.xlu0 %322
      %326 = vset.pattern.permute.xlu0 0
      %327 = vperm.xlu0 %326, %v38
      %v328 = vpop.permute.xlu0 %327
      %331 = vset.pattern.permute.xlu0 0
      %332 = vperm.xlu0 %331, %v39
      %v333 = vpop.permute.xlu0 %332
      %336 = vset.pattern.permute.xlu0 0
      %337 = vperm.xlu0 %336, %v40
      %v338 = vpop.permute.xlu0 %337
      %341 = vset.pattern.permute.xlu0 0
      %342 = vperm.xlu0 %341, %v41
      %v343 = vpop.permute.xlu0 %342
      %346 = vset.pattern.permute.xlu0 0
      %347 = vperm.xlu0 %346, %v42
      %v348 = vpop.permute.xlu0 %347
      %351 = vset.pattern.permute.xlu0 0
      %352 = vperm.xlu0 %351, %v43
      %v353 = vpop.permute.xlu0 %352
      %356 = vset.pattern.permute.xlu0 0
      %357 = vperm.xlu0 %356, %v44
      %v358 = vpop.permute.xlu0 %357
      %361 = vset.pattern.permute.xlu0 0
      %362 = vperm.xlu0 %361, %v45
      %v363 = vpop.permute.xlu0 %362
      %366 = vset.pattern.permute.xlu0 0
      %367 = vperm.xlu0 %366, %v46
      %v368 = vpop.permute.xlu0 %367
      %371 = vset.pattern.permute.xlu0 0
      %372 = vperm.xlu0 %371, %v47
      %v373 = vpop.permute.xlu0 %372
      %376 = vset.pattern.permute.xlu0 0
      %377 = vperm.xlu0 %376, %v48
      %v378 = vpop.permute.xlu0 %377
      %381 = vset.pattern.permute.xlu0 0
      %382 = vperm.xlu0 %381, %v49
      %v383 = vpop.permute.xlu0 %382
      %386 = vset.pattern.permute.xlu0 0
      %387 = vperm.xlu0 %386, %v50
      %v388 = vpop.permute.xlu0 %387
      %391 = vset.pattern.permute.xlu0 0
      %392 = vperm.xlu0 %391, %v51
      %v393 = vpop.permute.xlu0 %392
      %v395 = vmul.f32 %v283, %v318
      %v396 = vmul.f32 %v284, %v318
      %v397 = vmul.f32 %v285, %v323
      %v398 = vmul.f32 %v286, %v323
      %v399 = vmul.f32 %v287, %v328
      %v400 = vmul.f32 %v288, %v328
      %v401 = vmul.f32 %v289, %v333
      %v402 = vmul.f32 %v290, %v333
      %v403 = vmul.f32 %v291, %v338
      %v404 = vmul.f32 %v292, %v338
      %v405 = vmul.f32 %v293, %v343
      %v406 = vmul.f32 %v294, %v343
      %v407 = vmul.f32 %v295, %v348
      %v408 = vmul.f32 %v296, %v348
      %v409 = vmul.f32 %v297, %v353
      %v410 = vmul.f32 %v298, %v353
      %v411 = vmul.f32 %v299, %v358
      %v412 = vmul.f32 %v300, %v358
      %v413 = vmul.f32 %v301, %v363
      %v414 = vmul.f32 %v302, %v363
      %v415 = vmul.f32 %v303, %v368
      %v416 = vmul.f32 %v304, %v368
      %v417 = vmul.f32 %v305, %v373
      %v418 = vmul.f32 %v306, %v373
      %v419 = vmul.f32 %v307, %v378
      %v420 = vmul.f32 %v308, %v378
      %v421 = vmul.f32 %v309, %v383
      %v422 = vmul.f32 %v310, %v383
      %v423 = vmul.f32 %v311, %v388
      %v424 = vmul.f32 %v312, %v388
      %v425 = vmul.f32 %v313, %v393
      %v426 = vmul.f32 %v314, %v393
      %v427 = vadd.f32 %v395, %v397
      %v428 = vadd.f32 %v427, %v399
      %v429 = vadd.f32 %v428, %v401
      %v430 = vadd.f32 %v429, %v403
      %v431 = vadd.f32 %v430, %v405
      %v432 = vadd.f32 %v431, %v407
      %v433 = vadd.f32 %v432, %v409
      %v434 = vadd.f32 %v433, %v411
      %v435 = vadd.f32 %v434, %v413
      %v436 = vadd.f32 %v435, %v415
      %v437 = vadd.f32 %v436, %v417
      %v438 = vadd.f32 %v437, %v419
      %v439 = vadd.f32 %v438, %v421
      %v440 = vadd.f32 %v439, %v423
      %v441 = vadd.f32 %v440, %v425
      %v442 = vrot.slane %v441, 4
      %v443 = vadd.f32 %v441, %v442
      %v444 = vrot.slane %v443, 2
      %v445 = vadd.f32 %v443, %v444
      %v446 = vrot.slane %v445, 1
      %v447 = vadd.f32 %v445, %v446
      %v448 = vadd.f32 %v396, %v398
      %v449 = vadd.f32 %v448, %v400
      %v450 = vadd.f32 %v449, %v402
      %v451 = vadd.f32 %v450, %v404
      %v452 = vadd.f32 %v451, %v406
      %v453 = vadd.f32 %v452, %v408
      %v454 = vadd.f32 %v453, %v410
      %v455 = vadd.f32 %v454, %v412
      %v456 = vadd.f32 %v455, %v414
      %v457 = vadd.f32 %v456, %v416
      %v458 = vadd.f32 %v457, %v418
      %v459 = vadd.f32 %v458, %v420
      %v460 = vadd.f32 %v459, %v422
      %v461 = vadd.f32 %v460, %v424
      %v462 = vadd.f32 %v461, %v426
      %v463 = vrot.slane %v462, 4
      %v464 = vadd.f32 %v462, %v463
      %v465 = vrot.slane %v464, 2
      %v466 = vadd.f32 %v464, %v465
      %v467 = vrot.slane %v466, 1
      %v468 = vadd.f32 %v466, %v467
      %470 = vset.pattern.permute.xlu0 0
      %471 = vperm.xlu0 %470, %v52
      %v472 = vpop.permute.xlu0 %471
      %v474 = vlaneseq
      %v475 = vshrl.u32 %v474, 7
      %v476 = vsub.s32 0, %v475
      %v477 = vrot.slane %v472, %v476
      %v478 = vadd.f32 %v447, %v477
      %v479 = vadd.f32 %v468, %v477
      %v480 = vsub.f32 0.0, %v478
      %v481 = vsub.f32 0.0, %v479
      %v482 = vmul.f32 %v480, 1.442695
      %v483 = vpow.pop %v482
      %v484 = vmul.f32 %v481, 1.442695
      %v485 = vpow.pop %v484
      %v486 = vadd.f32 %v483, 1.0
      %v487 = vadd.f32 %v485, 1.0
      %v488 = vrcp.pop %v486
      %v489 = vrcp.pop %v487
      %v492 = vcombine.low %v488, %v489
      %v494 = vunpack.c.l.s4 1966171168
      %v495 = vunpack.c.0.s8 %v494
      %v496 = vlaneseq
      %v497 = vshrl.u32 %v496, 7
      %v498 = vsub.s32 %v495, %v497
      %v499 = vrot.slane %v492, %v498
      %v501 = vunpack.c.l.s4 1966171168
      %v502 = vunpack.c.0.s8 %v501
      %v503 = vlaneseq
      %v504 = vshrl.u32 %v503, 7
      %v505 = vsub.s32 %v502, %v504
      %v506 = vrot.slane %v499, %v505
      %s508 = smul.addr %s60, 2
      %s509 = scalar_lea.vmem [#allocation3], %s508
      %v510 = vlaneseq
      %vm511 = vcmp.ge.s32.totalorder %v510, 0
      %vm512 = vcmp.lt.s32.totalorder %v510, 256
      %vm513 = vmand %vm511, %vm512
      %s514 = scalar_lea.vmem %s509, 1 [#allocation3]
      %515 = vst.msk [vmem:[%s514] ss:$2 sm:$0x3] %vm513, %v506
      %v516 = vsub.f32 1.0, %v488
      %v517 = vsub.f32 1.0, %v489
      %v520 = vcombine.low %v516, %v517
      %v522 = vunpack.c.l.s4 1966171168
      %v523 = vunpack.c.0.s8 %v522
      %v524 = vlaneseq
      %v525 = vshrl.u32 %v524, 7
      %v526 = vsub.s32 %v523, %v525
      %v527 = vrot.slane %v520, %v526
      %v529 = vunpack.c.l.s4 1966171168
      %v530 = vunpack.c.0.s8 %v529
      %v531 = vlaneseq
      %v532 = vshrl.u32 %v531, 7
      %v533 = vsub.s32 %v530, %v532
      %v534 = vrot.slane %v527, %v533
      %536 = vst.msk [vmem:[%s509] ss:$2 sm:$0x3] %vm513, %v534
    $region22: #{tpu_custom_call.1} parent=1 // loop_footer
      %s58 = sadd.s32 1, %s54
    $region23: #{tpu_custom_call.1} parent=1 // loop_footer_branch
      %53 = sbr.rel target = $region19
    $region24: #{tpu_custom_call.1} parent=1 // loop_exit
      _
    // Predicated region
    $region25: #{tpu_custom_call.1} parent=1 // pred_check
      _
    $region26: #{tpu_custom_call.1} parent=1 // pred_check_branch
      %538 = sbr.rel (0) target = $region28
    $region27: #{tpu_custom_call.1} parent=1 // pred_region
      %s540 = ssub.s32 128, 128
      %541 = vsyncadd [#allocation4], %s540
      %s543 = sshll.u32 [#allocation3], 4
      %s544 = int_to_ptr.vmem [resolvable:$true] %s543
      %546 = dma.vmem_to_hbm [thread:$0]  %s544, 128, %s4, [#allocation4]
    $region28: #{tpu_custom_call.1} parent=1 // pred_fallthru
      _
    // Predicated region
    $region29: #{tpu_custom_call.1} parent=1 // pred_check
      _
    $region30: #{tpu_custom_call.1} parent=1 // pred_check_branch
      %548 = sbr.rel (0) target = $region32
    $region31: #{tpu_custom_call.1} parent=1 // pred_region
      %549 = dma.done [#allocation4], 128
    $region32: #{tpu_custom_call.1} parent=1 // pred_fallthru
      _
    %550 = vsyncpa [#allocation4], 1

</llo_original>
